<compile_context>
chip_gen: v5e
topology: v5e:2x2
jax: 0.10.0
libtpu: 0.0.40
codegen_flags: <defaults>
</compile_context>

<pallas_src>
import numpy as np
import jax
import jax.numpy as jnp
from jax.experimental import pallas as pl
from jax.experimental.pallas import tpu as pltpu


def _fused_kernel(m_ref, x_ref, o_ref):
    # One MXU matmul per grid step: (n, m1) @ (m1, TILE_L) -> (n, TILE_L).
    # K = m1 is tiny; the kernel is HBM-bound, not MXU-bound, so no K-tiling.
    o_ref[...] = jnp.dot(
        m_ref[...], x_ref[...], preferred_element_type=jnp.float32
    ).astype(o_ref.dtype)


def _round_up(a, b):
    return (a + b - 1) // b * b


def _folded_matrix(weights_fft, n):
    """M = Re(IF @ W^T @ F), shape (n, m1). Exact for real-valued x."""
    m1, m2 = weights_fft.shape

    # Forward DFT over dim of size m1: F[k, j] = exp(-2i*pi*k*j/m1)
    k = np.arange(m1)[:, None]
    j = np.arange(m1)[None, :]
    F = np.exp(-2j * np.pi * k * j / m1)                       # (m1, m1)

    # Inverse DFT of length n applied to a length-m2 vector (numpy/torch
    # semantics: crop or zero-pad the spectrum to length n first).
    kk = np.arange(n)[:, None]
    jj = np.arange(m2)[None, :]
    IF = np.exp(2j * np.pi * kk * jj / n) / n                  # (n, m2)
    if n < m2:
        IF[:, n:] = 0.0

    Wt = weights_fft.T.astype(jnp.complex64)                   # (m2, m1)
    Mc = jnp.asarray(IF, jnp.complex64) @ Wt @ jnp.asarray(F, jnp.complex64)
    return jnp.real(Mc).astype(jnp.float32)                    # (n, m1)


def fft1d_block(x, weights_fft, num=None, *, lane_tile=32768):
    """Pallas implementation of FFT1D_block.forward.

    x:            (B, modes1, L) real float32
    weights_fft:  (modes1, modes2) complex64
    returns:      (B, n, L) float32  with n = num or modes2
                  (num=0/None maps to modes2, matching PyTorch truthiness)
    """
    B, m1, L = x.shape
    m1_w, m2 = weights_fft.shape
    assert m1 == m1_w, "x dim 1 must equal modes1"
    n = num if num else m2

    # Fold the whole complex pipeline into one small real matrix (n, m1).
    M = _folded_matrix(weights_fft, n)

    x = x.astype(jnp.float32)

    # Lane tile along L: multiple of 128 (lane-dense, unmasked stores),
    # capped by lane_tile for VMEM.  If L <= 128 the block spans the full dim
    # (allowed even when not a multiple of 128).  A partial final tile is
    # handled by Pallas: garbage OOB reads feed columns whose writes fall
    # outside the output and are dropped — no explicit pad, no output slice.
    if L <= 128:
        tile_l = L
    else:
        tile_l = min(_round_up(lane_tile, 128), _round_up(L, 128))
    grid = (B, pl.cdiv(L, tile_l))

    # Double-buffered VMEM footprint: x tile + out tile + M, x2 buffers.
    x_blk = 4 * m1 * tile_l
    o_blk = 4 * n * tile_l
    m_blk = 4 * n * m1
    footprint = 2 * (x_blk + o_blk + m_blk)
    vmem_limit = int(min(max(footprint + (8 << 20), 16 << 20), 64 << 20))

    cost = pl.CostEstimate(
        flops=2 * n * m1 * B * L,
        transcendentals=0,
        bytes_accessed=4 * (m1 * B * L + n * B * L + n * m1),
    )

    out = pl.pallas_call(
        _fused_kernel,
        out_shape=jax.ShapeDtypeStruct((B, n, L), jnp.float32),
        grid_spec=pl.GridSpec(
            grid=grid,
            in_specs=[
                # Folded M: tiny, VMEM-resident across all grid steps.
                pl.BlockSpec((n, m1), lambda b, l: (0, 0)),
                # x in native layout: one batch element, full m1, one L tile.
                pl.BlockSpec((None, m1, tile_l), lambda b, l: (b, 0, l)),
            ],
            # Output written directly in (B, n, L) layout.
            out_specs=pl.BlockSpec((None, n, tile_l), lambda b, l: (b, 0, l)),
        ),
        compiler_params=pltpu.CompilerParams(
            # TODO(synk): on v7x, benchmark pltpu.CORE_PARALLEL on the batch
            # axis vs. plain "parallel" for explicit 2-TC sharding.
            dimension_semantics=("parallel", "parallel"),
            vmem_limit_bytes=vmem_limit,
        ),
        cost_estimate=cost,
    )(M, x)

    return out


def _reference(x, weights_fft, num=None):
    n = num if num else weights_fft.shape[1]
    x_ft = jnp.fft.fft(x.astype(jnp.complex64), axis=1)
    y_ft = jnp.einsum('bix,io->box', x_ft, weights_fft)
    return jnp.real(jnp.fft.ifft(y_ft, axis=1, n=n)).astype(jnp.float32)


if __name__ == "__main__":
    # Small shapes consistent with the module: batch=2, modes1=8, modes2=16, L=128.
    B, modes1, modes2, L = 2, 8, 16, 128
    num = None  # -> ifft length n = out_channels = modes2

    key = jax.random.PRNGKey(0)
    kx, kwr, kwi = jax.random.split(key, 3)

    x = jax.random.normal(kx, (B, modes1, L), dtype=jnp.float32)

    # Deterministic parameter init mirroring: scale * torch.rand(modes1, modes2, cfloat)
    scale = 1.0 / (modes1 * modes2)
    w_real = scale * jax.random.uniform(kwr, (modes1, modes2), dtype=jnp.float32)
    w_imag = scale * jax.random.uniform(kwi, (modes1, modes2), dtype=jnp.float32)
    weights_fft = (w_real + 1j * w_imag).astype(jnp.complex64)

    out = jax.block_until_ready(fft1d_block(x, weights_fft, num=num))

    ref = _reference(x, weights_fft, num=num)
    np.testing.assert_allclose(np.asarray(out), np.asarray(ref), atol=1e-4, rtol=1e-4)

    print("KERNEL_OK")
</pallas_src>

<mosaic_0001>
module attributes {stable_mosaic.version = 11 : i64} {
  func.func @_fused_kernel(%arg0: i32, %arg1: i32, %arg2: memref<16x8xf32, #tpu.memory_space<vmem>>, %arg3: memref<1x8x128xf32, #tpu.memory_space<vmem>>, %arg4: memref<1x16x128xf32, #tpu.memory_space<vmem>>) attributes {dimension_semantics = [#tpu.dimension_semantics<parallel>, #tpu.dimension_semantics<parallel>], iteration_bounds = array<i64: 2, 1>, scalar_prefetch = 0 : i64, scratch_operands = 0 : i64, tpu.core_type = #tpu.core_type<tc>, window_params = [{pipeline_mode = #tpu.pipeline_mode<synchronous>, transform_indices = @transform_0, window_bounds = array<i64: 16, 8>}, {transform_indices = @transform_1, window_bounds = array<i64: 1, 8, 128>}, {transform_indices = @transform_2, window_bounds = array<i64: 1, 16, 128>}]} {
    %c0 = arith.constant 0 : index
    %c0_0 = arith.constant 0 : index
    %0 = vector.load %arg2[%c0, %c0_0] : memref<16x8xf32, #tpu.memory_space<vmem>>, vector<16x8xf32>
    %c0_1 = arith.constant 0 : index
    %c0_2 = arith.constant 0 : index
    %c0_3 = arith.constant 0 : index
    %1 = vector.load %arg3[%c0_1, %c0_2, %c0_3] : memref<1x8x128xf32, #tpu.memory_space<vmem>>, vector<1x8x128xf32>
    %2 = vector.shape_cast %1 : vector<1x8x128xf32> to vector<8x128xf32>
    %cst = arith.constant dense<0.000000e+00> : vector<16x128xf32>
    %3 = tpu.matmul %0, %2, %cst {dimension_numbers = #tpu.dot_dimension_numbers<[1], [0], [0], [1], [0, 0, 1, 1], [], []>} : vector<16x8xf32>, vector<8x128xf32>, vector<16x128xf32> -> vector<16x128xf32>
    %c0_4 = arith.constant 0 : index
    %c0_5 = arith.constant 0 : index
    %c0_6 = arith.constant 0 : index
    %4 = vector.load %arg4[%c0_4, %c0_5, %c0_6] : memref<1x16x128xf32, #tpu.memory_space<vmem>>, vector<1x16x128xf32>
    %5 = vector.shape_cast %4 : vector<1x16x128xf32> to vector<16x128xf32>
    %6 = vector.shape_cast %3 : vector<16x128xf32> to vector<1x16x128xf32>
    tpu.vector_store %arg4[%c0_4, %c0_5, %c0_6], %6 {strides = array<i32>} : memref<1x16x128xf32, #tpu.memory_space<vmem>>, vector<1x16x128xf32>,
    return
  }
  func.func @transform_0(%arg0: i32, %arg1: i32) -> (i32, i32) {
    %c0_i32 = arith.constant 0 : i32
    %c0_i32_0 = arith.constant 0 : i32
    %c0_i32_1 = arith.constant 0 : i32
    return %c0_i32, %c0_i32_0 : i32, i32
  }
  func.func @transform_1(%arg0: i32, %arg1: i32) -> (i32, i32, i32) {
    %c0_i32 = arith.constant 0 : i32
    %c0_i32_0 = arith.constant 0 : i32
    return %arg0, %c0_i32, %arg1 : i32, i32, i32
  }
  func.func @transform_2(%arg0: i32, %arg1: i32) -> (i32, i32, i32) {
    %c0_i32 = arith.constant 0 : i32
    %c0_i32_0 = arith.constant 0 : i32
    return %arg0, %c0_i32, %arg1 : i32, i32, i32
  }
}

</mosaic_0001>

<llo_original>
// kernel: tpu_custom_call.1
$region0: #{tpu_custom_call.1}
  #allocation0 [shape = 'u32[]', space=smem, size = 0x4, offset = 0x4, fixed_abs, tag = 'smem constant byte address 0x4 - core index']
  #allocation1 [shape = 'u32[72,128]{1,0:T(1,128)}', space=vmem, size = 0x9000, scoped, tag = 'internal scratch']
  %s0 = inlined_call_operand.vmem [shape: f32[16,8], index: 0, kind: input, shape index: {}]
  %s1 = inlined_call_operand.vmem [shape: f32[2,8,128], index: 1, kind: input, shape index: {}]
  %s2 = inlined_call_operand.hbm [shape: f32[2,16,128], index: 2, kind: output, shape index: {}]
  %s3 = sld [smem:[#allocation0]]
  $region41: #{tpu_custom_call.1} parent=0
    _
  %s5 = ssub.s32 1, %s3
  %s6 = scalar_select 0, %s5, %s3
  $region1: #{tpu_custom_call.1} parent=0
    #allocation2 [shape = 'u8[16384]{0}', space=vmem, size = 0x4000, scoped, tag = 'output window, operand 0']
    #allocation3 [shape = 's32[2]{0}', space=sflag, size = 0x8, scoped, tag = 'scoped memory for tpu_custom_call.1']
    %7 = vsyncpa [#allocation3], 0
    %s8 = scalar_lea.sflag [#allocation3], 1
    %9 = vsyncpa %s8, 0
    loop: start=0, step=1, limit=4
    $region2: #{tpu_custom_call.1} parent=1 // loop_pre_header
      _
    $region3: #{tpu_custom_call.1} parent=1 // loop_header
      %s11 = sphi 0, %s15
      %p12 = scmp.ge.s32.totalorder %s11, 4
      %s18 = sphi 0, %s30
      %s19 = sphi 0, %s26
      %s20 = sphi 0, %s18
      %s21 = sphi 0, %s19
      %s22 = sphi 0, %s20
      %s23 = sphi 0, %s21
      %s31 = sphi 0, %s31
      %s33 = sphi 0, %s31
      %s34 = sphi 0, %s33
      %s48 = sphi 0, %s34
      %s56 = sphi 0, %s58
      %s59 = sphi 0, %s56
      %s60 = sphi 0, %s59
      %s76 = sphi 0, %s60
      %s84 = sphi 0, %s86
      %s87 = sphi 0, %s84
      %s88 = sphi 0, %s87
      %s104 = sphi 0, %s88
    $region4: #{tpu_custom_call.1} parent=1 // loop_header_branch
      %14 = sbr.rel (%p12) target = $region8
    $region5: #{tpu_custom_call.1} parent=1 // loop_body
      %s16 = ssub.s32 %s11, 1
      %s17 = ssub.s32 %s11, 2
      %s24 = sadd.s32 1, %s19
      %p25 = scmp.ge.s32.totalorder %s24, 1
      %s26 = scalar_select %p25, 0, %s24
      %s27 = sadd.s32 1, %s18
      %s28 = scalar_select %p25, %s27, %s18
      %p29 = scmp.ge.s32.totalorder %s28, 2
      %s30 = scalar_select %p29, 0, %s28
      %s32 = sadd.s32 %s31, 1
      %p35 = scmp.eq.s32.totalorder %s11, 1
      %p36 = scmp.ne.s32.totalorder %s31, %s33
      %p37 = scmp.eq.s32.totalorder %s11, 0
      %p38 = por %p36, %p37
      %p39 = scmp.ne.s32.totalorder %s31, %s33
      %p40 = scmp.eq.s32.totalorder %s16, 1
      %p41 = por %p39, %p40
      %p42 = scmp.ne.s32.totalorder %s33, %s34
      %p43 = scmp.eq.s32.totalorder %s16, 0
      %p44 = por %p42, %p43
      %p45 = scmp.ne.s32.totalorder %s33, %s34
      %p46 = scmp.eq.s32.totalorder %s17, 1
      %p47 = por %p45, %p46
      %p49 = scmp.ne.s32.totalorder %s34, %s48
      %p50 = scmp.eq.s32.totalorder %s17, 0
      %p51 = por %p49, %p50
      %s52 = ssub.s32 %s18, %s30
      %s53 = ssub.s32 %s19, %s26
      %s54 = sor.u32 %s52, %s53
      %p55 = scmp.eq.s32.totalorder %s54, 0
      %s57 = sadd.s32 %s56, 1
      %s58 = scalar_select %p55, %s56, %s57
      %p61 = pneg %p55
      %p62 = scmp.eq.s32.totalorder %s11, 1
      %p63 = por %p61, %p62
      %p64 = scmp.ne.s32.totalorder %s56, %s59
      %p65 = scmp.eq.s32.totalorder %s11, 0
      %p66 = por %p64, %p65
      %p67 = scmp.ne.s32.totalorder %s56, %s59
      %p68 = scmp.eq.s32.totalorder %s16, 1
      %p69 = por %p67, %p68
      %p70 = scmp.ne.s32.totalorder %s59, %s60
      %p71 = scmp.eq.s32.totalorder %s16, 0
      %p72 = por %p70, %p71
      %p73 = scmp.ne.s32.totalorder %s59, %s60
      %p74 = scmp.eq.s32.totalorder %s17, 1
      %p75 = por %p73, %p74
      %p77 = scmp.ne.s32.totalorder %s60, %s76
      %p78 = scmp.eq.s32.totalorder %s17, 0
      %p79 = por %p77, %p78
      %s80 = ssub.s32 %s18, %s30
      %s81 = ssub.s32 %s19, %s26
      %s82 = sor.u32 %s80, %s81
      %p83 = scmp.eq.s32.totalorder %s82, 0
      %s85 = sadd.s32 %s84, 1
      %s86 = scalar_select %p83, %s84, %s85
      %p89 = pneg %p83
      %p90 = scmp.eq.s32.totalorder %s11, 1
      %p91 = por %p89, %p90
      %p92 = scmp.ne.s32.totalorder %s84, %s87
      %p93 = scmp.eq.s32.totalorder %s11, 0
      %p94 = por %p92, %p93
      %p95 = scmp.ne.s32.totalorder %s84, %s87
      %p96 = scmp.eq.s32.totalorder %s16, 1
      %p97 = por %p95, %p96
      %p98 = scmp.ne.s32.totalorder %s87, %s88
      %p99 = scmp.eq.s32.totalorder %s16, 0
      %p100 = por %p98, %p99
      %p101 = scmp.ne.s32.totalorder %s87, %s88
      %p102 = scmp.eq.s32.totalorder %s17, 1
      %p103 = por %p101, %p102
      %p105 = scmp.ne.s32.totalorder %s88, %s104
      %p106 = scmp.eq.s32.totalorder %s17, 0
      %p107 = por %p105, %p106
      %p108 = scmp.le.s32.totalorder 1, %s11
      %p109 = scmp.lt.s32.totalorder %s11, 3
      %p110 = pnand %p108, %p109
      %p111 = pneg %p110
      // Predicated region
      $region9: #{tpu_custom_call.1} parent=5 // pred_check
        _
      $region10: #{tpu_custom_call.1} parent=5 // pred_check_branch
        %113 = sbr.rel (%p110) target = $region12
      $region11: #{tpu_custom_call.1} parent=5 // pred_region
        %s114 = ssub.s32 %s11, 1
        // Predicated region
        $region13: #{tpu_custom_call.1} parent=11 // pred_check
          %p115 = pneg %p44
        $region14: #{tpu_custom_call.1} parent=11 // pred_check_branch
          %117 = sbr.rel (%p115) target = $region16
        $region15: #{tpu_custom_call.1} parent=11 // pred_region
          _
        $region16: #{tpu_custom_call.1} parent=11 // pred_fallthru
          _
      $region12: #{tpu_custom_call.1} parent=5 // pred_fallthru
        _
      %p118 = scmp.lt.s32.totalorder %s11, 2
      // Predicated region
      $region17: #{tpu_custom_call.1} parent=5 // pred_check
        %p119 = pneg %p118
      $region18: #{tpu_custom_call.1} parent=5 // pred_check_branch
        %121 = sbr.rel (%p119) target = $region20
      $region19: #{tpu_custom_call.1} parent=5 // pred_region
        // Predicated region
        $region21: #{tpu_custom_call.1} parent=19 // pred_check
          %p122 = pneg %p66
        $region22: #{tpu_custom_call.1} parent=19 // pred_check_branch
          %124 = sbr.rel (%p122) target = $region24
        $region23: #{tpu_custom_call.1} parent=19 // pred_region
          %p125 = scmp.lt.s32.totalorder %s18, 1
          %s126 = scalar_select %p125, %s18, 1
          %p127 = scmp.lt.s32.totalorder %s19, 0
          %s128 = scalar_select %p127, %s19, 0
          %s129 = sadd.s32 %s128, %s126
          %s130 = smul.addr %s129, 8
          %s131 = scalar_lea.vmem %s1, %s130
        $region24: #{tpu_custom_call.1} parent=19 // pred_fallthru
          _
      $region20: #{tpu_custom_call.1} parent=5 // pred_fallthru
        _
      %p132 = scmp.le.s32.totalorder 1, %s11
      %p133 = scmp.lt.s32.totalorder %s11, 3
      %p134 = pnand %p132, %p133
      %p135 = pneg %p134
      // Predicated region
      $region25: #{tpu_custom_call.1} parent=5 // pred_check
        _
      $region26: #{tpu_custom_call.1} parent=5 // pred_check_branch
        %137 = sbr.rel (%p134) target = $region28
      $region27: #{tpu_custom_call.1} parent=5 // pred_region
        %s138 = ssub.s32 %s11, 1
        %p139 = pneg %p44
        %p140 = pneg %p41
        %p141 = scmp.lt.s32.totalorder %s20, 1
        %s142 = scalar_select %p141, %s20, 1
        %p143 = scmp.lt.s32.totalorder %s21, 0
        %s144 = scalar_select %p143, %s21, 0
        %s145 = sadd.s32 %s144, %s142
        %s146 = smul.addr %s145, 8
        %s147 = scalar_lea.vmem %s1, %s146
        %p148 = pneg %p72
        %p149 = pneg %p69
        %p150 = pneg %p100
        %p151 = pneg %p97
        %s152 = sand.u32 %s87, 1
        %s153 = scalar_lea.sflag [#allocation3], %s152
        %s154 = sand.u32 %s87, 1
        %s155 = smul.addr %s154, 16
        %s156 = scalar_lea.vmem [#allocation2], %s155
        %p157 = scmp.lt.s32.totalorder %s20, 1
        %s158 = scalar_select %p157, %s20, 1
        %p159 = scmp.lt.s32.totalorder %s21, 0
        %s160 = scalar_select %p159, %s21, 0
        %s161 = sadd.s32 %s160, %s158
        %s162 = smul.addr %s161, 8
        %s163 = scalar_lea.vmem %s1, %s162
        %v164 = vld [vmem:[%s0] sm:$0xff]
        %v165 = vld [vmem:[%s0 + $0x8] sm:$0xff]
        %v166 = vld [vmem:[%s163] sm:$0xff]
        %vm167 = vcmask 64512
        %v169 = vsel %vm167, %v164, 0
        %v172 = vsel %vm167, %v165, 0
        %174 = vmatpush.msra.mxu0 0.0
        %175 = vmatpush.msra.mxu0 0.0
        %176 = vmatpush.msra.mxu0 0.0
        %177 = vmatpush.msra.mxu0 0.0
        %178 = vmatpush.msra.mxu0 0.0
        %179 = vmatpush.msra.mxu0 0.0
        %180 = vmatpush.msra.mxu0 0.0
        %181 = vmatpush.msra.mxu0 0.0
        %182 = vmatpush.msra.mxu0 0.0
        %183 = vmatpush.msra.mxu0 0.0
        %184 = vmatpush.msra.mxu0 0.0
        %185 = vmatpush.msra.mxu0 0.0
        %186 = vmatpush.msra.mxu0 0.0
        %187 = vmatpush.msra.mxu0 0.0
        %188 = vmatpush.msra.mxu0 0.0
        %189 = vmatpush.msra.mxu0 %v166
        %190 = vmatmul.f32.gmra.mxu0 %v169
        %v191 = vpop.f32.mrf.mxu0
        %v192 = vadd.f32 0.0, %v191
        %193 = vmatmul.f32.gmra.mxu0 %v172
        %v194 = vpop.f32.mrf.mxu0
        %v195 = vadd.f32 0.0, %v194
        %196 = vdwg.mxu0
        %197 = vst [vmem:[%s156] sm:$0xff] %v192
        %198 = vst [vmem:[%s156 + $0x8] sm:$0xff] %v195
        %s199 = sand.u32 %s87, 1
        %s200 = scalar_lea.sflag [#allocation3], %s199
        %s201 = sand.u32 %s87, 1
        %s202 = smul.addr %s201, 16
        %s203 = scalar_lea.vmem [#allocation2], %s202
        // Predicated region
        $region29: #{tpu_custom_call.1} parent=27 // pred_check
          %p204 = pneg %p97
        $region30: #{tpu_custom_call.1} parent=27 // pred_check_branch
          %206 = sbr.rel (%p204) target = $region32
        $region31: #{tpu_custom_call.1} parent=27 // pred_region
          %208 = vsyncadd %s200, 0
          %s209 = smul.addr %s20, 2
          %s210 = sadd.s32 %s21, %s209
          %s211 = smul.addr %s210, 8
          %s212 = scalar_lea.hbm %s2, %s211
          %s213 = sshll.u32 %s203, 4
          %s214 = int_to_ptr.vmem [resolvable:$true] %s213
          %s215 = sshll.u32 %s212, 4
          %s216 = int_to_ptr.hbm [resolvable:$true] %s215
          %221 = dma.vmem_to_hbm [thread:$0]  %s214, 256, %s216, %s200, 128, 128, 8
        $region32: #{tpu_custom_call.1} parent=27 // pred_fallthru
          _
      $region28: #{tpu_custom_call.1} parent=5 // pred_fallthru
        _
      %p222 = scmp.le.s32.totalorder 2, %s11
      // Predicated region
      $region33: #{tpu_custom_call.1} parent=5 // pred_check
        %p223 = pneg %p222
      $region34: #{tpu_custom_call.1} parent=5 // pred_check_branch
        %225 = sbr.rel (%p223) target = $region36
      $region35: #{tpu_custom_call.1} parent=5 // pred_region
        %s226 = ssub.s32 %s11, 2
        // Predicated region
        $region37: #{tpu_custom_call.1} parent=35 // pred_check
          %p227 = pneg %p103
        $region38: #{tpu_custom_call.1} parent=35 // pred_check_branch
          %229 = sbr.rel (%p227) target = $region40
        $region39: #{tpu_custom_call.1} parent=35 // pred_region
          %s230 = sand.u32 %s88, 1
          %s231 = scalar_lea.sflag [#allocation3], %s230
          %s232 = sand.u32 %s88, 1
          %s233 = smul.addr %s232, 16
          %s234 = scalar_lea.vmem [#allocation2], %s233
          %236 = dma.done %s231, 256
        $region40: #{tpu_custom_call.1} parent=35 // pred_fallthru
          _
      $region36: #{tpu_custom_call.1} parent=5 // pred_fallthru
        _
    $region6: #{tpu_custom_call.1} parent=1 // loop_footer
      %s15 = sadd.s32 1, %s11
    $region7: #{tpu_custom_call.1} parent=1 // loop_footer_branch
      %10 = sbr.rel target = $region3
    $region8: #{tpu_custom_call.1} parent=1 // loop_exit
      _
    %237 = vsyncpa [#allocation3], 1
    %s238 = scalar_lea.sflag [#allocation3], 1
    %239 = vsyncpa %s238, 1

</llo_original>
